<compile_context>
chip_gen: v6e
topology: v6e:2x2x1
jax: 0.10.0
libtpu: 0.0.40
codegen_flags: <defaults>
</compile_context>

<pallas_src>
import math
import jax
import jax.numpy as jnp
from jax.experimental import pallas as pl
from jax.experimental.pallas import tpu as pltpu


def _round_up(x, m):
    return (x + m - 1) // m * m


def _recon_feature_kernel(a_ref, t_ref, w_ref, x_ref):
    """Fused: x = concat(A @ W[:k_a], T @ W[k_a:], axis=0), single store."""
    k_a = a_ref.shape[1]
    # Static sublane-aligned slices of the pre-stacked weight ref (k_a is a
    # multiple of 8 in the demo config; an unaligned k_a is still correct,
    # just a masked load).
    a_out = jnp.dot(a_ref[...], w_ref[0:k_a, :],
                    preferred_element_type=jnp.float32)
    t_out = jnp.dot(t_ref[...], w_ref[k_a:, :],
                    preferred_element_type=jnp.float32)
    # In-register sublane concat (n_A multiple of 8 -> no retiling), then one
    # unmasked lane-dense store of the whole concatenated output block.
    x_ref[...] = jnp.concatenate([a_out, t_out], axis=0).astype(x_ref.dtype)


def recon_feature_forward(A, T, W):
    """Single fused launch.  W = concat([transA, transT], axis=0).

    Returns (new_X, A_out, T_out).  When wrapping this in jax.jit, prefer
    returning only new_X and slicing A_out/T_out outside the jit -- returning
    the slices from a jitted function makes XLA materialize them as separate
    HBM buffers (extra output traffic at production scale).
    """
    n_a, k_a = A.shape
    n_t, k_t = T.shape
    k_w, out_dim = W.shape
    assert k_w == k_a + k_t, "W must be transA stacked on top of transT"

    out_dtype = jnp.result_type(A.dtype, T.dtype, W.dtype)

    # Keep the output lane-dense (out_dim a multiple of 128).  The demo config
    # (out_dim=128) takes the no-pad path; for other configs do this padding
    # once at init rather than per call.
    out_dim_p = _round_up(out_dim, 128)
    W_p = W if out_dim_p == out_dim else jnp.pad(
        W, ((0, 0), (0, out_dim_p - out_dim)))

    n_rows = n_a + n_t

    # Grid-less single-block call: every operand is a whole-array block
    # resident in VMEM (a few KiB here, far below any generation's scoped
    # VMEM limit), so there is no pipeline / grid-loop wrapper at all.
    new_X = pl.pallas_call(
        _recon_feature_kernel,
        out_shape=jax.ShapeDtypeStruct((n_rows, out_dim_p), out_dtype),
        in_specs=[
            pl.BlockSpec(memory_space=pltpu.MemorySpace.VMEM),  # A
            pl.BlockSpec(memory_space=pltpu.MemorySpace.VMEM),  # T
            pl.BlockSpec(memory_space=pltpu.MemorySpace.VMEM),  # W (stacked)
        ],
        out_specs=pl.BlockSpec(memory_space=pltpu.MemorySpace.VMEM),
    )(A, T, W_p)

    if out_dim_p != out_dim:
        new_X = new_X[:, :out_dim]

    A_out = new_X[:n_a]
    T_out = new_X[n_a:]
    return new_X, A_out, T_out


def xavier_uniform(key, shape, gain=1.414, dtype=jnp.float32):
    fan_in, fan_out = shape[0], shape[1]
    bound = gain * math.sqrt(6.0 / (fan_in + fan_out))
    return jax.random.uniform(key, shape, dtype=dtype, minval=-bound, maxval=bound)


class ReconFeature:
    """JAX/Pallas equivalent of the PyTorch recon_feature module."""

    def __init__(self, num_node, feat_dim, out_dim, key, dtype=jnp.float32):
        k1, k2 = jax.random.split(key)
        self.transA = xavier_uniform(k1, (num_node, out_dim), dtype=dtype)
        self.transT = xavier_uniform(k2, (feat_dim, out_dim), dtype=dtype)
        # Pre-stack the two (non-trainable) weights ONCE at init: the kernel
        # then needs a single weight DMA instead of two.  For production on
        # v6e/v7x store this in bf16 (f32 accumulation stays in the kernel).
        self.W = jnp.concatenate([self.transA, self.transT], axis=0)

    def __call__(self, A, T):
        return recon_feature_forward(A, T, self.W)


if __name__ == "__main__":
    key = jax.random.PRNGKey(0)
    k_params, k_A, k_T = jax.random.split(key, 3)

    num_node, feat_dim, out_dim = 16, 32, 128

    module = ReconFeature(num_node, feat_dim, out_dim, k_params)

    # A: adjacency-like matrix [num_node, num_node]; T: features [num_node, feat_dim]
    A = jax.random.normal(k_A, (num_node, num_node), dtype=jnp.float32)
    T = jax.random.normal(k_T, (num_node, feat_dim), dtype=jnp.float32)

    new_X, A_out, T_out = module(A, T)
    jax.block_until_ready((new_X, A_out, T_out))

    # correctness check against a plain-JAX reference
    ref_A = A @ module.transA
    ref_T = T @ module.transT
    ref_X = jnp.concatenate((ref_A, ref_T), axis=0)
    assert new_X.shape == (2 * num_node, out_dim)
    assert jnp.allclose(A_out, ref_A, atol=1e-5)
    assert jnp.allclose(T_out, ref_T, atol=1e-5)
    assert jnp.allclose(new_X, ref_X, atol=1e-5)

    print("KERNEL_OK")
</pallas_src>

<mosaic_0001>
module attributes {stable_mosaic.version = 11 : i64} {
  func.func @_recon_feature_kernel(%arg0: memref<16x16xf32, #tpu.memory_space<vmem>>, %arg1: memref<16x32xf32, #tpu.memory_space<vmem>>, %arg2: memref<48x128xf32, #tpu.memory_space<vmem>>, %arg3: memref<32x128xf32, #tpu.memory_space<vmem>>) attributes {dimension_semantics = [], scalar_prefetch = 0 : i64, scratch_operands = 0 : i64, tpu.core_type = #tpu.core_type<tc>} {
    %c0 = arith.constant 0 : index
    %c0_0 = arith.constant 0 : index
    %0 = vector.load %arg0[%c0, %c0_0] : memref<16x16xf32, #tpu.memory_space<vmem>>, vector<16x16xf32>
    %c0_1 = arith.constant 0 : index
    %c0_2 = arith.constant 0 : index
    %1 = vector.load %arg2[%c0_1, %c0_2] : memref<48x128xf32, #tpu.memory_space<vmem>>, vector<16x128xf32>
    %cst = arith.constant dense<0.000000e+00> : vector<16x128xf32>
    %2 = tpu.matmul %0, %1, %cst {dimension_numbers = #tpu.dot_dimension_numbers<[1], [0], [0], [1], [0, 0, 1, 1], [], []>} : vector<16x16xf32>, vector<16x128xf32>, vector<16x128xf32> -> vector<16x128xf32>
    %c0_3 = arith.constant 0 : index
    %c0_4 = arith.constant 0 : index
    %3 = vector.load %arg1[%c0_3, %c0_4] : memref<16x32xf32, #tpu.memory_space<vmem>>, vector<16x32xf32>
    %c16 = arith.constant 16 : index
    %c0_5 = arith.constant 0 : index
    %4 = vector.load %arg2[%c16, %c0_5] : memref<48x128xf32, #tpu.memory_space<vmem>>, vector<32x128xf32>
    %cst_6 = arith.constant dense<0.000000e+00> : vector<16x128xf32>
    %5 = tpu.matmul %3, %4, %cst_6 {dimension_numbers = #tpu.dot_dimension_numbers<[1], [0], [0], [1], [0, 0, 1, 1], [], []>} : vector<16x32xf32>, vector<32x128xf32>, vector<16x128xf32> -> vector<16x128xf32>
    %6 = tpu.concatenate %2, %5 in 0 : vector<16x128xf32>, vector<16x128xf32> -> vector<32x128xf32>
    %c0_7 = arith.constant 0 : index
    %c0_8 = arith.constant 0 : index
    %7 = vector.load %arg3[%c0_7, %c0_8] : memref<32x128xf32, #tpu.memory_space<vmem>>, vector<32x128xf32>
    tpu.vector_store %arg3[%c0_7, %c0_8], %6 {strides = array<i32>} : memref<32x128xf32, #tpu.memory_space<vmem>>, vector<32x128xf32>,
    return
  }
}

</mosaic_0001>

<llo_original>
// kernel: tpu_custom_call.1
$region0: #{tpu_custom_call.1}
  #allocation0 [shape = 'u32[]', space=smem, size = 0x4, offset = 0x4, fixed_abs, tag = 'smem constant byte address 0x4 - core index']
  #allocation1 [shape = 'u32[144,128]{1,0:T(1,128)}', space=vmem, size = 0x12000, scoped, tag = 'internal scratch']
  %s0 = inlined_call_operand.hbm [shape: f32[16,16], index: 0, kind: input, shape index: {}]
  %s1 = inlined_call_operand.hbm [shape: f32[16,32], index: 1, kind: input, shape index: {}]
  %s2 = inlined_call_operand.hbm [shape: f32[48,128], index: 2, kind: input, shape index: {}]
  %s3 = inlined_call_operand.hbm [shape: f32[32,128], index: 3, kind: output, shape index: {}]
  %s4 = sld [smem:[#allocation0]]
  $region34: #{tpu_custom_call.1} parent=0
    _
  %s6 = ssub.s32 1, %s4
  %s7 = scalar_select 0, %s6, %s4
  $region1: #{tpu_custom_call.1} parent=0
    #allocation2 [shape = 'u8[8192]{0}', space=vmem, size = 0x2000, scoped, tag = 'input window, operand 0, single buffered']
    #allocation3 [shape = 's32[1]{0}', space=sflag, size = 0x4, scoped, tag = 'scoped memory for tpu_custom_call.1']
    #allocation4 [shape = 's32[1]{0}', space=sflag, size = 0x4, scoped, tag = 'scoped memory for tpu_custom_call.1']
    #allocation5 [shape = 'u8[8192]{0}', space=vmem, size = 0x2000, scoped, tag = 'input window, operand 1, single buffered']
    #allocation6 [shape = 's32[1]{0}', space=sflag, size = 0x4, scoped, tag = 'scoped memory for tpu_custom_call.1']
    #allocation7 [shape = 'u8[24576]{0}', space=vmem, size = 0x6000, scoped, tag = 'input window, operand 2, single buffered']
    #allocation8 [shape = 'u8[16384]{0}', space=vmem, size = 0x4000, scoped, tag = 'output window, operand 0, single buffered']
    %8 = vsyncpa [#allocation3], 0
    %9 = vsyncpa [#allocation6], 0
    %10 = vsyncpa [#allocation4], 0
    // Predicated region
    $region2: #{tpu_custom_call.1} parent=1 // pred_check
      _
    $region3: #{tpu_custom_call.1} parent=1 // pred_check_branch
      %12 = sbr.rel (0) target = $region5
    $region4: #{tpu_custom_call.1} parent=1 // pred_region
      %s14 = ssub.s32 256, 256
      %15 = vsyncadd [#allocation3], %s14
      %s16 = sshll.u32 [#allocation2], 4
      %s17 = int_to_ptr.vmem [resolvable:$true] %s16
      %22 = dma.hbm_to_vmem [thread:$0]  %s0, 256, %s17, [#allocation3], 128, 128, 8
    $region5: #{tpu_custom_call.1} parent=1 // pred_fallthru
      _
    // Predicated region
    $region6: #{tpu_custom_call.1} parent=1 // pred_check
      _
    $region7: #{tpu_custom_call.1} parent=1 // pred_check_branch
      %24 = sbr.rel (0) target = $region9
    $region8: #{tpu_custom_call.1} parent=1 // pred_region
      %s26 = ssub.s32 256, 256
      %27 = vsyncadd [#allocation6], %s26
      %s28 = sshll.u32 [#allocation5], 4
      %s29 = int_to_ptr.vmem [resolvable:$true] %s28
      %34 = dma.hbm_to_vmem [thread:$0]  %s1, 256, %s29, [#allocation6], 128, 128, 8
    $region9: #{tpu_custom_call.1} parent=1 // pred_fallthru
      _
    // Predicated region
    $region10: #{tpu_custom_call.1} parent=1 // pred_check
      _
    $region11: #{tpu_custom_call.1} parent=1 // pred_check_branch
      %36 = sbr.rel (0) target = $region13
    $region12: #{tpu_custom_call.1} parent=1 // pred_region
      %s38 = ssub.s32 768, 768
      %39 = vsyncadd [#allocation6], %s38
      %s40 = sshll.u32 [#allocation7], 4
      %s41 = int_to_ptr.vmem [resolvable:$true] %s40
      %46 = dma.hbm_to_vmem [thread:$0]  %s2, 768, %s41, [#allocation6], 128, 128, 8
    $region13: #{tpu_custom_call.1} parent=1 // pred_fallthru
      _
    // Predicated region
    $region14: #{tpu_custom_call.1} parent=1 // pred_check
      _
    $region15: #{tpu_custom_call.1} parent=1 // pred_check_branch
      %48 = sbr.rel (0) target = $region17
    $region16: #{tpu_custom_call.1} parent=1 // pred_region
      %49 = dma.done [#allocation3], 256
    $region17: #{tpu_custom_call.1} parent=1 // pred_fallthru
      _
    // Predicated region
    $region18: #{tpu_custom_call.1} parent=1 // pred_check
      _
    $region19: #{tpu_custom_call.1} parent=1 // pred_check_branch
      %51 = sbr.rel (0) target = $region21
    $region20: #{tpu_custom_call.1} parent=1 // pred_region
      %52 = dma.done [#allocation6], 256
    $region21: #{tpu_custom_call.1} parent=1 // pred_fallthru
      _
    // Predicated region
    $region22: #{tpu_custom_call.1} parent=1 // pred_check
      _
    $region23: #{tpu_custom_call.1} parent=1 // pred_check_branch
      %54 = sbr.rel (0) target = $region25
    $region24: #{tpu_custom_call.1} parent=1 // pred_region
      %55 = dma.done [#allocation6], 768
    $region25: #{tpu_custom_call.1} parent=1 // pred_fallthru
      _
    %v56 = vld [vmem:[#allocation2] sm:$0xff]
    %v57 = vld [vmem:[#allocation2 + $0x8] sm:$0xff]
    %v58 = vld [vmem:[#allocation7] sm:$0xff]
    %v59 = vld [vmem:[#allocation7 + $0x8] sm:$0xff]
    %vm60 = vcmask 130048
    %v62 = vsel %vm60, %v56, 0
    %v65 = vsel %vm60, %v57, 0
    %67 = vmatprep.subr.mxu0 0.0
    %68 = vmatpush1.msra.mxu0 0.0
    %69 = vmatprep.subr.mxu0 0.0
    %70 = vmatpush1.msra.mxu0 0.0
    %71 = vmatprep.subr.mxu0 0.0
    %72 = vmatpush1.msra.mxu0 0.0
    %73 = vmatprep.subr.mxu0 0.0
    %74 = vmatpush1.msra.mxu0 0.0
    %75 = vmatprep.subr.mxu0 0.0
    %76 = vmatpush1.msra.mxu0 0.0
    %77 = vmatprep.subr.mxu0 0.0
    %78 = vmatpush1.msra.mxu0 0.0
    %79 = vmatprep.subr.mxu0 0.0
    %80 = vmatpush1.msra.mxu0 0.0
    %81 = vmatprep.subr.mxu0 0.0
    %82 = vmatpush1.msra.mxu0 0.0
    %83 = vmatprep.subr.mxu0 0.0
    %84 = vmatpush1.msra.mxu0 0.0
    %85 = vmatprep.subr.mxu0 0.0
    %86 = vmatpush1.msra.mxu0 0.0
    %87 = vmatprep.subr.mxu0 0.0
    %88 = vmatpush1.msra.mxu0 0.0
    %89 = vmatprep.subr.mxu0 0.0
    %90 = vmatpush1.msra.mxu0 0.0
    %91 = vmatprep.subr.mxu0 0.0
    %92 = vmatpush1.msra.mxu0 0.0
    %93 = vmatprep.subr.mxu0 0.0
    %94 = vmatpush1.msra.mxu0 0.0
    %95 = vmatprep.subr.mxu0 0.0
    %96 = vmatpush1.msra.mxu0 %v59
    %97 = vmatprep.subr.mxu0 0.0
    %98 = vmatpush1.msra.mxu0 %v58
    %99 = vmatprep.subr.mxu0 0.0
    %100 = vmatpush2.msra.mxu0 0.0
    %101 = vmatprep.subr.mxu0 0.0
    %102 = vmatpush2.msra.mxu0 0.0
    %103 = vmatprep.subr.mxu0 0.0
    %104 = vmatpush2.msra.mxu0 0.0
    %105 = vmatprep.subr.mxu0 0.0
    %106 = vmatpush2.msra.mxu0 0.0
    %107 = vmatprep.subr.mxu0 0.0
    %108 = vmatpush2.msra.mxu0 0.0
    %109 = vmatprep.subr.mxu0 0.0
    %110 = vmatpush2.msra.mxu0 0.0
    %111 = vmatprep.subr.mxu0 0.0
    %112 = vmatpush2.msra.mxu0 0.0
    %113 = vmatprep.subr.mxu0 0.0
    %114 = vmatpush2.msra.mxu0 0.0
    %115 = vmatprep.subr.mxu0 0.0
    %116 = vmatpush2.msra.mxu0 0.0
    %117 = vmatprep.subr.mxu0 0.0
    %118 = vmatpush2.msra.mxu0 0.0
    %119 = vmatprep.subr.mxu0 0.0
    %120 = vmatpush2.msra.mxu0 0.0
    %121 = vmatprep.subr.mxu0 0.0
    %122 = vmatpush2.msra.mxu0 0.0
    %123 = vmatprep.subr.mxu0 0.0
    %124 = vmatpush2.msra.mxu0 0.0
    %125 = vmatprep.subr.mxu0 0.0
    %126 = vmatpush2.msra.mxu0 0.0
    %127 = vmatprep.subr.mxu0 0.0
    %128 = vmatpush2.msra.mxu0 0.0
    %129 = vmatprep.subr.mxu0 0.0
    %130 = vmatpush2.msra.mxu0 0.0
    %131 = vmatprep.mubr.f32.mxu0 0.0
    %132 = vmatmul.mubr.f32.gmra.mxu0 %v62
    %v133 = vpop.f32.mrf.mxu0
    %v134 = vadd.f32 0.0, %v133
    %v135 = vpop.f32.mrf.mxu0
    %136 = vmatprep.mubr.f32.mxu0 0.0
    %137 = vmatmul.mubr.f32.gmra.mxu0 %v65
    %v138 = vpop.f32.mrf.mxu0
    %v139 = vadd.f32 0.0, %v138
    %v140 = vpop.f32.mrf.mxu0
    %141 = vdwg.mxu0
    %v142 = vld [vmem:[#allocation5] sm:$0xff]
    %v143 = vld [vmem:[#allocation5 + $0x8] sm:$0xff]
    %v144 = vld [vmem:[#allocation7 + $0x10] sm:$0xff]
    %v145 = vld [vmem:[#allocation7 + $0x18] sm:$0xff]
    %v146 = vld [vmem:[#allocation7 + $0x20] sm:$0xff]
    %v147 = vld [vmem:[#allocation7 + $0x28] sm:$0xff]
    %vm148 = vcmask 261120
    %v150 = vsel %vm148, %v142, 0
    %v153 = vsel %vm148, %v143, 0
    %155 = vmatprep.subr.mxu0 0.0
    %156 = vmatpush1.msra.mxu0 0.0
    %157 = vmatprep.subr.mxu0 0.0
    %158 = vmatpush1.msra.mxu0 0.0
    %159 = vmatprep.subr.mxu0 0.0
    %160 = vmatpush1.msra.mxu0 0.0
    %161 = vmatprep.subr.mxu0 0.0
    %162 = vmatpush1.msra.mxu0 0.0
    %163 = vmatprep.subr.mxu0 0.0
    %164 = vmatpush1.msra.mxu0 0.0
    %165 = vmatprep.subr.mxu0 0.0
    %166 = vmatpush1.msra.mxu0 0.0
    %167 = vmatprep.subr.mxu0 0.0
    %168 = vmatpush1.msra.mxu0 0.0
    %169 = vmatprep.subr.mxu0 0.0
    %170 = vmatpush1.msra.mxu0 0.0
    %171 = vmatprep.subr.mxu0 0.0
    %172 = vmatpush1.msra.mxu0 0.0
    %173 = vmatprep.subr.mxu0 0.0
    %174 = vmatpush1.msra.mxu0 0.0
    %175 = vmatprep.subr.mxu0 0.0
    %176 = vmatpush1.msra.mxu0 0.0
    %177 = vmatprep.subr.mxu0 0.0
    %178 = vmatpush1.msra.mxu0 0.0
    %179 = vmatprep.subr.mxu0 0.0
    %180 = vmatpush1.msra.mxu0 %v147
    %181 = vmatprep.subr.mxu0 0.0
    %182 = vmatpush1.msra.mxu0 %v146
    %183 = vmatprep.subr.mxu0 0.0
    %184 = vmatpush1.msra.mxu0 %v145
    %185 = vmatprep.subr.mxu0 0.0
    %186 = vmatpush1.msra.mxu0 %v144
    %187 = vmatprep.subr.mxu0 0.0
    %188 = vmatpush2.msra.mxu0 0.0
    %189 = vmatprep.subr.mxu0 0.0
    %190 = vmatpush2.msra.mxu0 0.0
    %191 = vmatprep.subr.mxu0 0.0
    %192 = vmatpush2.msra.mxu0 0.0
    %193 = vmatprep.subr.mxu0 0.0
    %194 = vmatpush2.msra.mxu0 0.0
    %195 = vmatprep.subr.mxu0 0.0
    %196 = vmatpush2.msra.mxu0 0.0
    %197 = vmatprep.subr.mxu0 0.0
    %198 = vmatpush2.msra.mxu0 0.0
    %199 = vmatprep.subr.mxu0 0.0
    %200 = vmatpush2.msra.mxu0 0.0
    %201 = vmatprep.subr.mxu0 0.0
    %202 = vmatpush2.msra.mxu0 0.0
    %203 = vmatprep.subr.mxu0 0.0
    %204 = vmatpush2.msra.mxu0 0.0
    %205 = vmatprep.subr.mxu0 0.0
    %206 = vmatpush2.msra.mxu0 0.0
    %207 = vmatprep.subr.mxu0 0.0
    %208 = vmatpush2.msra.mxu0 0.0
    %209 = vmatprep.subr.mxu0 0.0
    %210 = vmatpush2.msra.mxu0 0.0
    %211 = vmatprep.subr.mxu0 0.0
    %212 = vmatpush2.msra.mxu0 0.0
    %213 = vmatprep.subr.mxu0 0.0
    %214 = vmatpush2.msra.mxu0 0.0
    %215 = vmatprep.subr.mxu0 0.0
    %216 = vmatpush2.msra.mxu0 0.0
    %217 = vmatprep.subr.mxu0 0.0
    %218 = vmatpush2.msra.mxu0 0.0
    %219 = vmatprep.mubr.f32.mxu0 0.0
    %220 = vmatmul.mubr.f32.gmra.mxu0 %v150
    %v221 = vpop.f32.mrf.mxu0
    %v222 = vadd.f32 0.0, %v221
    %v223 = vpop.f32.mrf.mxu0
    %224 = vmatprep.mubr.f32.mxu0 0.0
    %225 = vmatmul.mubr.f32.gmra.mxu0 %v153
    %v226 = vpop.f32.mrf.mxu0
    %v227 = vadd.f32 0.0, %v226
    %v228 = vpop.f32.mrf.mxu0
    %229 = vdwg.mxu0
    %230 = vst [vmem:[#allocation8] sm:$0xff] %v134
    %231 = vst [vmem:[#allocation8 + $0x8] sm:$0xff] %v139
    %232 = vst [vmem:[#allocation8 + $0x10] sm:$0xff] %v222
    %233 = vst [vmem:[#allocation8 + $0x18] sm:$0xff] %v227
    // Predicated region
    $region26: #{tpu_custom_call.1} parent=1 // pred_check
      _
    $region27: #{tpu_custom_call.1} parent=1 // pred_check_branch
      %235 = sbr.rel (0) target = $region29
    $region28: #{tpu_custom_call.1} parent=1 // pred_region
      %s237 = ssub.s32 512, 512
      %238 = vsyncadd [#allocation4], %s237
      %s239 = sshll.u32 [#allocation8], 4
      %s240 = int_to_ptr.vmem [resolvable:$true] %s239
      %245 = dma.vmem_to_hbm [thread:$0]  %s240, 512, %s3, [#allocation4], 128, 128, 8
    $region29: #{tpu_custom_call.1} parent=1 // pred_fallthru
      _
    // Predicated region
    $region30: #{tpu_custom_call.1} parent=1 // pred_check
      _
    $region31: #{tpu_custom_call.1} parent=1 // pred_check_branch
      %247 = sbr.rel (0) target = $region33
    $region32: #{tpu_custom_call.1} parent=1 // pred_region
      %248 = dma.done [#allocation4], 512
    $region33: #{tpu_custom_call.1} parent=1 // pred_fallthru
      _
    %249 = vsyncpa [#allocation3], 1
    %250 = vsyncpa [#allocation6], 1
    %251 = vsyncpa [#allocation4], 1

</llo_original>
